<compile_context>
chip_gen: v7x
topology: tpu7x:2x2x1
jax: 0.10.0
libtpu: 0.0.40
codegen_flags: <defaults>
</compile_context>

<pallas_src>
import functools
import math
from typing import Dict, Tuple

import numpy as np
import jax
import jax.numpy as jnp
from jax.experimental import pallas as pl
from jax.experimental.pallas import tpu as pltpu


# ----------------------------------------------------------------------------
# Generation-aware VMEM budget: ~55% of per-core VMEM fits v7x's 64 MiB/TC
# while letting v5e/v6e's 128 MiB grow the activation tiles.
# ----------------------------------------------------------------------------
def _vmem_budget_bytes() -> int:
    try:
        cap = int(pltpu.get_tpu_info().vmem_capacity_bytes)
    except Exception:                         # interpret mode / older runtimes
        cap = 64 << 20
    return max(int(0.55 * cap), 16 << 20)


# ----------------------------------------------------------------------------
# Pallas kernels
# ----------------------------------------------------------------------------
def _patch_conv_relu_kernel(x_ref, w_ref, b_ref, o_ref, *, p: int):
    """Fused patchify-conv + bias + ReLU on one tile of patch rows.

      x_ref: (TR, p, Wo, p*Cin)  bf16 activation tile
      w_ref: (p, p*Cin, TCout)   bf16 weights (ph-major; (pw, ci) flattened)
      b_ref: (1, TCout)          f32 bias
      o_ref: (TR*Wo, TCout)      output tile (flat M x Cout, lane-dense)

    The whole tile is one matmul per ph (M = TR*Wo), accumulated in f32.
    """
    tr, _, wo, pc = x_ref.shape
    m = tr * wo
    acc = None
    for ph in range(p):                                   # p == 2: tiny static unroll
        xs = x_ref[:, ph, :, :].astype(jnp.bfloat16).reshape(m, pc)
        part = jnp.dot(xs, w_ref[ph], preferred_element_type=jnp.float32)
        acc = part if acc is None else acc + part
    o_ref[...] = jnp.maximum(acc + b_ref[...], 0.0).astype(o_ref.dtype)


def _matmul_bias_relu_kernel(x_ref, w_ref, b_ref, o_ref):
    """Plain (TM, K) x (K, Cout) matmul + bias + ReLU (used by the stem)."""
    acc = jnp.dot(x_ref[...].astype(jnp.bfloat16), w_ref[...],
                  preferred_element_type=jnp.float32)
    o_ref[...] = jnp.maximum(acc + b_ref[...], 0.0).astype(o_ref.dtype)


# ----------------------------------------------------------------------------
# Wrappers
# ----------------------------------------------------------------------------
def patch_conv_relu(x_nhwc: jax.Array, w: jax.Array, b: jax.Array,
                    patch: int, out_dtype=jnp.bfloat16) -> jax.Array:
    """Non-overlapping (patch x patch), stride-`patch` conv + ReLU via Pallas."""
    N, H, W, C = x_nhwc.shape
    assert H % patch == 0 and W % patch == 0, "spatial dims must divide stride"
    Ho, Wo = H // patch, W // patch
    pC = patch * C
    Cout = w.shape[-1]
    R = N * Ho                                   # rows of patches
    M_total = R * Wo                             # total output rows (flat)

    # Free (no-copy) patchify view: (N,H,W,C) -> (N*Ho, p, Wo, p*C).
    x_view = x_nhwc.reshape(R, patch, Wo, pC)

    # Cout blocking (second "parallel" grid axis): 256-wide blocks keep the
    # v6e/v7x 2x256^2 MXU full and give v7x's second TC work for small grids.
    # TODO(synk): on v5e (4x128^2 MXU) a 128-wide Cout block would be native.
    TCout = min(Cout, 256)
    assert Cout % TCout == 0
    n_cout = Cout // TCout

    x_bytes = x_view.dtype.itemsize
    o_bytes = np.dtype(out_dtype).itemsize
    budget = _vmem_budget_bytes()
    fixed = 2 * (patch * pC * TCout * w.dtype.itemsize + TCout * 4)
    per_row = 2 * (patch * Wo * pC * x_bytes + Wo * TCout * o_bytes)  # dbl-buffered

    # Fold whole patch-rows into the MXU M dim; target M = TR*Wo ~ 512 rows
    # per step (amortizes ~0.35us/step, keeps MXU + DMA pipeline busy) with
    # TR*Wo a multiple of 8 (sublane tiling) unless a single block covers R.
    step = 8 // math.gcd(Wo, 8)
    tr = min(R,
             max(1, -(-512 // Wo)),
             max(1, (budget - fixed) // max(per_row, 1)))
    if tr < R:
        tr = max(step, (tr // step) * step)
        tr = min(tr, R)
    TR = int(tr)
    TM = TR * Wo

    grid = (pl.cdiv(R, TR), n_cout)
    vmem_limit = int(min(budget, max(fixed + TR * per_row + (4 << 20), 16 << 20)))

    flops = 2 * M_total * (patch * pC) * Cout
    bytes_accessed = (int(x_view.size) * x_bytes + int(w.size) * w.dtype.itemsize
                      + Cout * 4 + M_total * Cout * o_bytes)

    kernel = functools.partial(_patch_conv_relu_kernel, p=patch)
    out = pl.pallas_call(
        kernel,
        out_shape=jax.ShapeDtypeStruct((M_total, Cout), out_dtype),
        grid=grid,
        in_specs=[
            pl.BlockSpec((TR, patch, Wo, pC), lambda i, j: (i, 0, 0, 0)),
            pl.BlockSpec((patch, pC, TCout), lambda i, j: (0, 0, j)),
            pl.BlockSpec((1, TCout), lambda i, j: (0, j)),
        ],
        out_specs=pl.BlockSpec((TM, TCout), lambda i, j: (i, j)),
        compiler_params=pltpu.CompilerParams(
            dimension_semantics=("parallel", "parallel"),
            vmem_limit_bytes=vmem_limit),
        cost_estimate=pl.CostEstimate(flops=int(flops), transcendentals=0,
                                      bytes_accessed=int(bytes_accessed)),
    )(x_view, w, b.reshape(1, Cout).astype(jnp.float32))
    return out.reshape(N, Ho, Wo, Cout)          # free reshape back


def stem_conv_relu(x_nhwc: jax.Array, w2d: jax.Array, b: jax.Array,
                   patch: int, out_dtype=jnp.bfloat16) -> jax.Array:
    """3-channel stem: im2col-pack in XLA (cheap for 3 channels), then one
    lane-dense K = patch*patch*3 matmul + bias + ReLU in Pallas.  Avoids the
    12-lane (~10x padded) input blocks a patchify BlockSpec would produce."""
    N, H, W, C = x_nhwc.shape
    assert H % patch == 0 and W % patch == 0
    Ho, Wo = H // patch, W // patch
    K = patch * patch * C
    Cout = w2d.shape[-1]
    M = N * Ho * Wo

    x2d = (x_nhwc.reshape(N, Ho, patch, Wo, patch, C)
                 .transpose(0, 1, 3, 2, 4, 5)
                 .reshape(M, K))

    TM = min(M, 1024)
    if TM < M:
        TM = max(8, (TM // 8) * 8)
    grid = (pl.cdiv(M, TM),)

    o_bytes = np.dtype(out_dtype).itemsize
    working = (2 * TM * (K * x2d.dtype.itemsize + Cout * o_bytes)
               + 2 * (K * Cout * w2d.dtype.itemsize + Cout * 4) + (4 << 20))
    vmem_limit = int(min(_vmem_budget_bytes(), max(working, 16 << 20)))

    out = pl.pallas_call(
        _matmul_bias_relu_kernel,
        out_shape=jax.ShapeDtypeStruct((M, Cout), out_dtype),
        grid=grid,
        in_specs=[
            pl.BlockSpec((TM, K), lambda i: (i, 0)),
            pl.BlockSpec((K, Cout), lambda i: (0, 0)),
            pl.BlockSpec((1, Cout), lambda i: (0, 0)),
        ],
        out_specs=pl.BlockSpec((TM, Cout), lambda i: (i, 0)),
        compiler_params=pltpu.CompilerParams(
            dimension_semantics=("parallel",),
            vmem_limit_bytes=vmem_limit),
        cost_estimate=pl.CostEstimate(
            flops=int(2 * M * K * Cout), transcendentals=0,
            bytes_accessed=int(M * K * x2d.dtype.itemsize
                               + K * Cout * w2d.dtype.itemsize
                               + Cout * 4 + M * Cout * o_bytes)),
    )(x2d, w2d, b.reshape(1, Cout).astype(jnp.float32))
    return out.reshape(N, Ho, Wo, Cout)


# ----------------------------------------------------------------------------
# Mask nearest-interpolation (== F.interpolate(mode='nearest') then .bool()).
# Index-gather glue; exact match for these integer downsample ratios.
# ----------------------------------------------------------------------------
def interpolate_mask_nearest(m_bool: jax.Array, out_hw: Tuple[int, int]) -> jax.Array:
    N, H, W = m_bool.shape
    ho, wo = out_hw
    rows = (jnp.arange(ho) * H) // ho
    cols = (jnp.arange(wo) * W) // wo
    mf = m_bool.astype(jnp.float32)              # matches m[None].float()
    mi = mf[:, rows, :][:, :, cols]
    return mi.astype(jnp.bool_)                  # matches .to(torch.bool)[0]


# ----------------------------------------------------------------------------
# BackboneBase equivalent
# ----------------------------------------------------------------------------
class BackboneBasePallas:
    """Mirrors BackboneBase(backbone, train_backbone, return_interm_layers).

    Synthetic 4-stage strided-conv tower (channels chosen so every stage
    output is a multiple of 128 -> lane-dense stores):
        stem  : stride 4 -> 128 ch
        layer2: stride 2 -> total  8, 128 ch
        layer3: stride 2 -> total 16, 256 ch
        layer4: stride 2 -> total 32, 512 ch
    """

    C_STEM, C_L2, C_L3, C_L4 = 128, 128, 256, 512

    def __init__(self, key: jax.Array, train_backbone: bool,
                 return_interm_layers: bool):
        # TODO(synk): requires_grad_ freezing is training-only; no forward effect.
        if return_interm_layers:
            self.return_layers = {"layer2": "0", "layer3": "1", "layer4": "2"}
            self.strides = [8, 16, 32]
            self.num_channels = [self.C_L2, self.C_L3, self.C_L4]
        else:
            self.return_layers = {"layer4": "0"}
            self.strides = [32]
            self.num_channels = [self.C_L4]

        def he(k, fan_in, shape):
            w = jax.random.normal(k, shape, jnp.float32) * jnp.sqrt(2.0 / fan_in)
            return w.astype(jnp.bfloat16)        # bf16 MXU operands

        k0, k1, k2, k3 = jax.random.split(key, 4)
        cin = 3
        self.params = {
            # stem weights stored pre-im2col'd: (p*p*cin, cout)
            "stem":   (he(k0, 16 * cin, (16 * cin, self.C_STEM)),
                       jnp.zeros((self.C_STEM,), jnp.float32), 4),
            # layer weights: (p, p*cin, cout), ph-major, (pw, ci) flattened
            "layer2": (he(k1, 4 * self.C_STEM, (2, 2 * self.C_STEM, self.C_L2)),
                       jnp.zeros((self.C_L2,), jnp.float32), 2),
            "layer3": (he(k2, 4 * self.C_L2, (2, 2 * self.C_L2, self.C_L3)),
                       jnp.zeros((self.C_L3,), jnp.float32), 2),
            "layer4": (he(k3, 4 * self.C_L3, (2, 2 * self.C_L3, self.C_L4)),
                       jnp.zeros((self.C_L4,), jnp.float32), 2),
        }

    def _body(self, x_nchw: jax.Array) -> Dict[str, jax.Array]:
        """IntermediateLayerGetter equivalent -> {out_name: NCHW f32 feature}.
        One layout transpose of the 3-channel image; bf16 activations chained
        between stages; f32 upcast fused into the returned-feature transpose."""
        x = jnp.transpose(x_nchw, (0, 2, 3, 1)).astype(jnp.bfloat16)
        w, bias, patch = self.params["stem"]
        x = stem_conv_relu(x, w, bias, patch)
        feats = {}
        for lname in ("layer2", "layer3", "layer4"):
            w, bias, patch = self.params[lname]
            x = patch_conv_relu(x, w, bias, patch)       # always bf16 out
            if lname in self.return_layers:
                # TODO(synk): drop this NCHW transpose if downstream takes NHWC.
                feats[self.return_layers[lname]] = (
                    jnp.transpose(x, (0, 3, 1, 2)).astype(jnp.float32))
        return feats

    def forward(self, tensors: jax.Array, mask: jax.Array):
        """tensors: (N, 3, H, W) f32; mask: (N, H, W) bool (True = padding).
        Returns {name: (feature NCHW f32, mask (N, h, w) bool)}."""
        xs = self._body(tensors)
        out = {}
        for name, x in xs.items():
            h, w = x.shape[-2:]
            out[name] = (x, interpolate_mask_nearest(mask, (h, w)))
        return out


# ----------------------------------------------------------------------------
if __name__ == "__main__":
    key = jax.random.PRNGKey(0)
    k_img, k_param = jax.random.split(key)

    N, C, H, W = 2, 3, 64, 64
    x = jax.random.normal(k_img, (N, C, H, W), jnp.float32)
    # padding mask: True where padded (right/bottom strip), like NestedTensor.mask
    col = jnp.arange(W)[None, None, :] >= jnp.array([48, 56])[:, None, None]
    row = jnp.arange(H)[None, :, None] >= jnp.array([56, 48])[:, None, None]
    mask = jnp.broadcast_to(col | row, (N, H, W))

    backbone = BackboneBasePallas(k_param, train_backbone=True,
                                  return_interm_layers=True)
    out = backbone.forward(x, mask)

    for name in sorted(out):
        feat, fmask = out[name]
        jax.block_until_ready(feat)
        jax.block_until_ready(fmask)
        assert feat.shape[-2:] == fmask.shape[-2:]
        assert fmask.dtype == jnp.bool_
        assert feat.dtype == jnp.float32
        assert bool(jnp.all(jnp.isfinite(feat)))

    # sanity on declared strides / channels
    assert out["0"][0].shape == (N, 128, H // 8, W // 8)
    assert out["1"][0].shape == (N, 256, H // 16, W // 16)
    assert out["2"][0].shape == (N, 512, H // 32, W // 32)

    print("KERNEL_OK")
</pallas_src>

<mosaic_0001>
module attributes {stable_mosaic.version = 11 : i64} {
  func.func @_matmul_bias_relu_kernel(%arg0: i32, %arg1: memref<512x48xbf16, #tpu.memory_space<vmem>>, %arg2: memref<48x128xbf16, #tpu.memory_space<vmem>>, %arg3: memref<1x128xf32, #tpu.memory_space<vmem>>, %arg4: memref<512x128xbf16, #tpu.memory_space<vmem>>) attributes {dimension_semantics = [#tpu.dimension_semantics<parallel>], iteration_bounds = array<i64: 1>, scalar_prefetch = 0 : i64, scratch_operands = 0 : i64, tpu.core_type = #tpu.core_type<tc>, window_params = [{transform_indices = @transform_0, window_bounds = array<i64: 512, 48>}, {pipeline_mode = #tpu.pipeline_mode<synchronous>, transform_indices = @transform_1, window_bounds = array<i64: 48, 128>}, {pipeline_mode = #tpu.pipeline_mode<synchronous>, transform_indices = @transform_2, window_bounds = array<i64: 1, 128>}, {transform_indices = @transform_3, window_bounds = array<i64: 512, 128>}]} {
    %c0 = arith.constant 0 : index
    %c0_0 = arith.constant 0 : index
    %0 = vector.load %arg1[%c0, %c0_0] : memref<512x48xbf16, #tpu.memory_space<vmem>>, vector<512x48xbf16>
    %c0_1 = arith.constant 0 : index
    %c0_2 = arith.constant 0 : index
    %1 = vector.load %arg2[%c0_1, %c0_2] : memref<48x128xbf16, #tpu.memory_space<vmem>>, vector<48x128xbf16>
    %cst = arith.constant dense<0.000000e+00> : vector<512x128xf32>
    %2 = tpu.matmul %0, %1, %cst {dimension_numbers = #tpu.dot_dimension_numbers<[1], [0], [0], [1], [0, 0, 1, 1], [], []>} : vector<512x48xbf16>, vector<48x128xbf16>, vector<512x128xf32> -> vector<512x128xf32>
    %c0_3 = arith.constant 0 : index
    %c0_4 = arith.constant 0 : index
    %3 = vector.load %arg3[%c0_3, %c0_4] : memref<1x128xf32, #tpu.memory_space<vmem>>, vector<1x128xf32>
    %4 = vector.broadcast %3 : vector<1x128xf32> to vector<512x128xf32>
    %5 = arith.addf %2, %4 : vector<512x128xf32>
    %cst_5 = arith.constant 0.000000e+00 : f32
    %6 = vector.broadcast %cst_5 : f32 to vector<512x128xf32>
    %7 = arith.maximumf %5, %6 : vector<512x128xf32>
    %8 = arith.truncf %7 : vector<512x128xf32> to vector<512x128xbf16>
    %c0_6 = arith.constant 0 : index
    %c0_7 = arith.constant 0 : index
    %9 = vector.load %arg4[%c0_6, %c0_7] : memref<512x128xbf16, #tpu.memory_space<vmem>>, vector<512x128xbf16>
    tpu.vector_store %arg4[%c0_6, %c0_7], %8 {strides = array<i32>} : memref<512x128xbf16, #tpu.memory_space<vmem>>, vector<512x128xbf16>,
    return
  }
  func.func @transform_0(%arg0: i32) -> (i32, i32) {
    %c0_i32 = arith.constant 0 : i32
    %c0_i32_0 = arith.constant 0 : i32
    return %arg0, %c0_i32 : i32, i32
  }
  func.func @transform_1(%arg0: i32) -> (i32, i32) {
    %c0_i32 = arith.constant 0 : i32
    %c0_i32_0 = arith.constant 0 : i32
    %c0_i32_1 = arith.constant 0 : i32
    return %c0_i32, %c0_i32_0 : i32, i32
  }
  func.func @transform_2(%arg0: i32) -> (i32, i32) {
    %c0_i32 = arith.constant 0 : i32
    %c0_i32_0 = arith.constant 0 : i32
    %c0_i32_1 = arith.constant 0 : i32
    return %c0_i32, %c0_i32_0 : i32, i32
  }
  func.func @transform_3(%arg0: i32) -> (i32, i32) {
    %c0_i32 = arith.constant 0 : i32
    %c0_i32_0 = arith.constant 0 : i32
    return %arg0, %c0_i32 : i32, i32
  }
}

</mosaic_0001>

<llo_original>
// kernel: tpu_custom_call.1
$region0: #{tpu_custom_call.1}
  #allocation0 [shape = 'u32[]', space=smem, size = 0x4, offset = 0x4, fixed_abs, tag = 'smem constant byte address 0x4 - core index']
  #allocation1 [shape = 'u32[144,128]{1,0:T(1,128)}', space=vmem, size = 0x12000, scoped, tag = 'internal scratch']
  %s0 = inlined_call_operand.vmem [shape: bf16[512,48], index: 0, kind: input, shape index: {}]
  %s1 = inlined_call_operand.vmem [shape: bf16[48,128], index: 1, kind: input, shape index: {}]
  %s2 = inlined_call_operand.vmem [shape: f32[1,128], index: 2, kind: input, shape index: {}]
  %s3 = inlined_call_operand.hbm [shape: bf16[512,128], index: 3, kind: output, shape index: {}]
  %s4 = sld [smem:[#allocation0]]
  $region22: #{tpu_custom_call.1} parent=0
    _
  %s6 = ssub.s32 1, %s4
  %s7 = scalar_select 0, %s6, %s4
  $region1: #{tpu_custom_call.1} parent=0
    #allocation2 [shape = 'u8[131072]{0}', space=vmem, size = 0x20000, scoped, tag = 'output window, operand 0, single buffered']
    #allocation3 [shape = 's32[1]{0}', space=sflag, size = 0x4, scoped, tag = 'scoped memory for tpu_custom_call.1']
    %8 = vsyncpa [#allocation3], 0
    // Predicated region
    $region2: #{tpu_custom_call.1} parent=1 // pred_check
      _
    $region3: #{tpu_custom_call.1} parent=1 // pred_check_branch
      %10 = sbr.rel (0) target = $region5
    $region4: #{tpu_custom_call.1} parent=1 // pred_region
      _
    $region5: #{tpu_custom_call.1} parent=1 // pred_fallthru
      _
    // Predicated region
    $region6: #{tpu_custom_call.1} parent=1 // pred_check
      _
    $region7: #{tpu_custom_call.1} parent=1 // pred_check_branch
      %12 = sbr.rel (0) target = $region9
    $region8: #{tpu_custom_call.1} parent=1 // pred_region
      _
    $region9: #{tpu_custom_call.1} parent=1 // pred_fallthru
      _
    // Predicated region
    $region10: #{tpu_custom_call.1} parent=1 // pred_check
      _
    $region11: #{tpu_custom_call.1} parent=1 // pred_check_branch
      %14 = sbr.rel (0) target = $region13
    $region12: #{tpu_custom_call.1} parent=1 // pred_region
      _
    $region13: #{tpu_custom_call.1} parent=1 // pred_fallthru
      _
    %v16 = vld [vmem:[%s0] sm:$0xf]
    %v17 = vld [vmem:[%s0 + $0x4] sm:$0xf]
    %v18 = vld [vmem:[%s0 + $0x8] sm:$0xf]
    %v19 = vld [vmem:[%s0 + $0xc] sm:$0xf]
    %v20 = vld [vmem:[%s0 + $0x10] sm:$0xf]
    %v21 = vld [vmem:[%s0 + $0x14] sm:$0xf]
    %v22 = vld [vmem:[%s0 + $0x18] sm:$0xf]
    %v23 = vld [vmem:[%s0 + $0x1c] sm:$0xf]
    %v24 = vld [vmem:[%s0 + $0x20] sm:$0xf]
    %v25 = vld [vmem:[%s0 + $0x24] sm:$0xf]
    %v26 = vld [vmem:[%s0 + $0x28] sm:$0xf]
    %v27 = vld [vmem:[%s0 + $0x2c] sm:$0xf]
    %v28 = vld [vmem:[%s0 + $0x30] sm:$0xf]
    %v29 = vld [vmem:[%s0 + $0x34] sm:$0xf]
    %v30 = vld [vmem:[%s0 + $0x38] sm:$0xf]
    %v31 = vld [vmem:[%s0 + $0x3c] sm:$0xf]
    %v32 = vld [vmem:[%s0 + $0x40] sm:$0xf]
    %v33 = vld [vmem:[%s0 + $0x44] sm:$0xf]
    %v34 = vld [vmem:[%s0 + $0x48] sm:$0xf]
    %v35 = vld [vmem:[%s0 + $0x4c] sm:$0xf]
    %v36 = vld [vmem:[%s0 + $0x50] sm:$0xf]
    %v37 = vld [vmem:[%s0 + $0x54] sm:$0xf]
    %v38 = vld [vmem:[%s0 + $0x58] sm:$0xf]
    %v39 = vld [vmem:[%s0 + $0x5c] sm:$0xf]
    %v40 = vld [vmem:[%s0 + $0x60] sm:$0xf]
    %v41 = vld [vmem:[%s0 + $0x64] sm:$0xf]
    %v42 = vld [vmem:[%s0 + $0x68] sm:$0xf]
    %v43 = vld [vmem:[%s0 + $0x6c] sm:$0xf]
    %v44 = vld [vmem:[%s0 + $0x70] sm:$0xf]
    %v45 = vld [vmem:[%s0 + $0x74] sm:$0xf]
    %v46 = vld [vmem:[%s0 + $0x78] sm:$0xf]
    %v47 = vld [vmem:[%s0 + $0x7c] sm:$0xf]
    %v48 = vld [vmem:[%s0 + $0x80] sm:$0xf]
    %v49 = vld [vmem:[%s0 + $0x84] sm:$0xf]
    %v50 = vld [vmem:[%s0 + $0x88] sm:$0xf]
    %v51 = vld [vmem:[%s0 + $0x8c] sm:$0xf]
    %v52 = vld [vmem:[%s0 + $0x90] sm:$0xf]
    %v53 = vld [vmem:[%s0 + $0x94] sm:$0xf]
    %v54 = vld [vmem:[%s0 + $0x98] sm:$0xf]
    %v55 = vld [vmem:[%s0 + $0x9c] sm:$0xf]
    %v56 = vld [vmem:[%s0 + $0xa0] sm:$0xf]
    %v57 = vld [vmem:[%s0 + $0xa4] sm:$0xf]
    %v58 = vld [vmem:[%s0 + $0xa8] sm:$0xf]
    %v59 = vld [vmem:[%s0 + $0xac] sm:$0xf]
    %v60 = vld [vmem:[%s0 + $0xb0] sm:$0xf]
    %v61 = vld [vmem:[%s0 + $0xb4] sm:$0xf]
    %v62 = vld [vmem:[%s0 + $0xb8] sm:$0xf]
    %v63 = vld [vmem:[%s0 + $0xbc] sm:$0xf]
    %v64 = vld [vmem:[%s0 + $0xc0] sm:$0xf]
    %v65 = vld [vmem:[%s0 + $0xc4] sm:$0xf]
    %v66 = vld [vmem:[%s0 + $0xc8] sm:$0xf]
    %v67 = vld [vmem:[%s0 + $0xcc] sm:$0xf]
    %v68 = vld [vmem:[%s0 + $0xd0] sm:$0xf]
    %v69 = vld [vmem:[%s0 + $0xd4] sm:$0xf]
    %v70 = vld [vmem:[%s0 + $0xd8] sm:$0xf]
    %v71 = vld [vmem:[%s0 + $0xdc] sm:$0xf]
    %v72 = vld [vmem:[%s0 + $0xe0] sm:$0xf]
    %v73 = vld [vmem:[%s0 + $0xe4] sm:$0xf]
    %v74 = vld [vmem:[%s0 + $0xe8] sm:$0xf]
    %v75 = vld [vmem:[%s0 + $0xec] sm:$0xf]
    %v76 = vld [vmem:[%s0 + $0xf0] sm:$0xf]
    %v77 = vld [vmem:[%s0 + $0xf4] sm:$0xf]
    %v78 = vld [vmem:[%s0 + $0xf8] sm:$0xf]
    %v79 = vld [vmem:[%s0 + $0xfc] sm:$0xf]
    %v80 = vld [vmem:[%s1] sm:$0xf]
    %v81 = vld [vmem:[%s1 + $0x4] sm:$0xf]
    %v82 = vld [vmem:[%s1 + $0x8] sm:$0xf]
    %v83 = vld [vmem:[%s1 + $0xc] sm:$0xf]
    %v84 = vld [vmem:[%s1 + $0x10] sm:$0xf]
    %v85 = vld [vmem:[%s1 + $0x14] sm:$0xf]
    %v86 = vld [vmem:[%s2] sm:$0x1]
    %v88 = vlaneseq
    %v89 = vshrl.u32 %v88, 7
    %v90 = vsub.s32 0, %v89
    %v91 = vrot.slane %v86, %v90
    %v157 = vunpack.c.l.b16 %v16
    %v158 = vunpack.c.l.b16 %v17
    %v159 = vunpack.c.l.b16 %v18
    %v160 = vunpack.c.l.b16 %v19
    %v161 = vunpack.c.l.b16 %v20
    %v162 = vunpack.c.l.b16 %v21
    %v163 = vunpack.c.l.b16 %v22
    %v164 = vunpack.c.l.b16 %v23
    %v165 = vunpack.c.l.b16 %v24
    %v166 = vunpack.c.l.b16 %v25
    %v167 = vunpack.c.l.b16 %v26
    %v168 = vunpack.c.l.b16 %v27
    %v169 = vunpack.c.l.b16 %v28
    %v170 = vunpack.c.l.b16 %v29
    %v171 = vunpack.c.l.b16 %v30
    %v172 = vunpack.c.l.b16 %v31
    %v173 = vunpack.c.l.b16 %v32
    %v174 = vunpack.c.l.b16 %v33
    %v175 = vunpack.c.l.b16 %v34
    %v176 = vunpack.c.l.b16 %v35
    %v177 = vunpack.c.l.b16 %v36
    %v178 = vunpack.c.l.b16 %v37
    %v179 = vunpack.c.l.b16 %v38
    %v180 = vunpack.c.l.b16 %v39
    %v181 = vunpack.c.l.b16 %v40
    %v182 = vunpack.c.l.b16 %v41
    %v183 = vunpack.c.l.b16 %v42
    %v184 = vunpack.c.l.b16 %v43
    %v185 = vunpack.c.l.b16 %v44
    %v186 = vunpack.c.l.b16 %v45
    %v187 = vunpack.c.l.b16 %v46
    %v188 = vunpack.c.l.b16 %v47
    %v189 = vunpack.c.l.b16 %v48
    %v190 = vunpack.c.l.b16 %v49
    %v191 = vunpack.c.l.b16 %v50
    %v192 = vunpack.c.l.b16 %v51
    %v193 = vunpack.c.l.b16 %v52
    %v194 = vunpack.c.l.b16 %v53
    %v195 = vunpack.c.l.b16 %v54
    %v196 = vunpack.c.l.b16 %v55
    %v197 = vunpack.c.l.b16 %v56
    %v198 = vunpack.c.l.b16 %v57
    %v199 = vunpack.c.l.b16 %v58
    %v200 = vunpack.c.l.b16 %v59
    %v201 = vunpack.c.l.b16 %v60
    %v202 = vunpack.c.l.b16 %v61
    %v203 = vunpack.c.l.b16 %v62
    %v204 = vunpack.c.l.b16 %v63
    %v205 = vunpack.c.l.b16 %v64
    %v206 = vunpack.c.l.b16 %v65
    %v207 = vunpack.c.l.b16 %v66
    %v208 = vunpack.c.l.b16 %v67
    %v209 = vunpack.c.l.b16 %v68
    %v210 = vunpack.c.l.b16 %v69
    %v211 = vunpack.c.l.b16 %v70
    %v212 = vunpack.c.l.b16 %v71
    %v213 = vunpack.c.l.b16 %v72
    %v214 = vunpack.c.l.b16 %v73
    %v215 = vunpack.c.l.b16 %v74
    %v216 = vunpack.c.l.b16 %v75
    %v217 = vunpack.c.l.b16 %v76
    %v218 = vunpack.c.l.b16 %v77
    %v219 = vunpack.c.l.b16 %v78
    %v220 = vunpack.c.l.b16 %v79
    %v221 = vpack.c.b16 %v158, %v157
    %v222 = vpack.c.b16 %v160, %v159
    %v223 = vpack.c.b16 %v162, %v161
    %v224 = vpack.c.b16 %v164, %v163
    %v225 = vpack.c.b16 %v166, %v165
    %v226 = vpack.c.b16 %v168, %v167
    %v227 = vpack.c.b16 %v170, %v169
    %v228 = vpack.c.b16 %v172, %v171
    %v229 = vpack.c.b16 %v174, %v173
    %v230 = vpack.c.b16 %v176, %v175
    %v231 = vpack.c.b16 %v178, %v177
    %v232 = vpack.c.b16 %v180, %v179
    %v233 = vpack.c.b16 %v182, %v181
    %v234 = vpack.c.b16 %v184, %v183
    %v235 = vpack.c.b16 %v186, %v185
    %v236 = vpack.c.b16 %v188, %v187
    %v237 = vpack.c.b16 %v190, %v189
    %v238 = vpack.c.b16 %v192, %v191
    %v239 = vpack.c.b16 %v194, %v193
    %v240 = vpack.c.b16 %v196, %v195
    %v241 = vpack.c.b16 %v198, %v197
    %v242 = vpack.c.b16 %v200, %v199
    %v243 = vpack.c.b16 %v202, %v201
    %v244 = vpack.c.b16 %v204, %v203
    %v245 = vpack.c.b16 %v206, %v205
    %v246 = vpack.c.b16 %v208, %v207
    %v247 = vpack.c.b16 %v210, %v209
    %v248 = vpack.c.b16 %v212, %v211
    %v249 = vpack.c.b16 %v214, %v213
    %v250 = vpack.c.b16 %v216, %v215
    %v251 = vpack.c.b16 %v218, %v217
    %v252 = vpack.c.b16 %v220, %v219
    %v259 = vunpack.c.l.b16 %v80
    %v260 = vunpack.c.l.b16 %v81
    %v261 = vunpack.c.l.b16 %v82
    %v262 = vunpack.c.l.b16 %v83
    %v263 = vunpack.c.l.b16 %v84
    %v264 = vunpack.c.l.b16 %v85
    %v265 = vpack.c.b16 %v260, %v259
    %v266 = vpack.c.b16 %v262, %v261
    %v267 = vpack.c.b16 %v264, %v263
    %vm271 = vcmask 392192
    %v273 = vsel %vm271, %v221, 0
    %v276 = vsel %vm271, %v222, 0
    %v279 = vsel %vm271, %v223, 0
    %v282 = vsel %vm271, %v224, 0
    %v285 = vsel %vm271, %v225, 0
    %v288 = vsel %vm271, %v226, 0
    %v291 = vsel %vm271, %v227, 0
    %v294 = vsel %vm271, %v228, 0
    %v297 = vsel %vm271, %v229, 0
    %v300 = vsel %vm271, %v230, 0
    %v303 = vsel %vm271, %v231, 0
    %v306 = vsel %vm271, %v232, 0
    %v309 = vsel %vm271, %v233, 0
    %v312 = vsel %vm271, %v234, 0
    %v315 = vsel %vm271, %v235, 0
    %v318 = vsel %vm271, %v236, 0
    %v321 = vsel %vm271, %v237, 0
    %v324 = vsel %vm271, %v238, 0
    %v327 = vsel %vm271, %v239, 0
    %v330 = vsel %vm271, %v240, 0
    %v333 = vsel %vm271, %v241, 0
    %v336 = vsel %vm271, %v242, 0
    %v339 = vsel %vm271, %v243, 0
    %v342 = vsel %vm271, %v244, 0
    %v345 = vsel %vm271, %v245, 0
    %v348 = vsel %vm271, %v246, 0
    %v351 = vsel %vm271, %v247, 0
    %v354 = vsel %vm271, %v248, 0
    %v357 = vsel %vm271, %v249, 0
    %v360 = vsel %vm271, %v250, 0
    %v363 = vsel %vm271, %v251, 0
    %v366 = vsel %vm271, %v252, 0
    %368 = vmatprep.subr.bf16.mxu0 0
    %369 = vmatpush1.bf16.msra.mxu0 %v265
    %370 = vmatprep.subr.bf16.mxu0 0
    %371 = vmatpush1.bf16.msra.mxu0 %v266
    %372 = vmatprep.subr.bf16.mxu0 0
    %373 = vmatpush1.bf16.msra.mxu0 %v267
    %374 = vmatprep.subr.bf16.mxu0 0
    %375 = vmatpush1.bf16.msra.mxu0 0
    %376 = vmatprep.subr.bf16.mxu0 0
    %377 = vmatpush1.bf16.msra.mxu0 0
    %378 = vmatprep.subr.bf16.mxu0 0
    %379 = vmatpush1.bf16.msra.mxu0 0
    %380 = vmatprep.subr.bf16.mxu0 0
    %381 = vmatpush1.bf16.msra.mxu0 0
    %382 = vmatprep.subr.bf16.mxu0 0
    %383 = vmatpush1.bf16.msra.mxu0 0
    %384 = vmatprep.subr.bf16.mxu0 0
    %385 = vmatpush1.bf16.msra.mxu0 0
    %386 = vmatprep.subr.bf16.mxu0 0
    %387 = vmatpush1.bf16.msra.mxu0 0
    %388 = vmatprep.subr.bf16.mxu0 0
    %389 = vmatpush1.bf16.msra.mxu0 0
    %390 = vmatprep.subr.bf16.mxu0 0
    %391 = vmatpush1.bf16.msra.mxu0 0
    %392 = vmatprep.subr.bf16.mxu0 0
    %393 = vmatpush1.bf16.msra.mxu0 0
    %394 = vmatprep.subr.bf16.mxu0 0
    %395 = vmatpush1.bf16.msra.mxu0 0
    %396 = vmatprep.subr.bf16.mxu0 0
    %397 = vmatpush1.bf16.msra.mxu0 0
    %398 = vmatprep.subr.bf16.mxu0 0
    %399 = vmatpush1.bf16.msra.mxu0 0
    %400 = vmatprep.mubr.bf16.mxu0 0
    %401 = vmatmul.mubr.bf16.gmra.mrb[0].mxu0 %v273
    %v402 = vpop.f32.mrb[0].mxu0
    %v403 = vadd.f32 %v91, %v402
    %v404 = vpop.f32.mrb[0].mxu0
    %v405 = vpop.f32.mrb[0].mxu0
    %v406 = vadd.f32 %v91, %v405
    %v407 = vpop.f32.mrb[0].mxu0
    %408 = vmatprep.mubr.bf16.mxu0 0
    %409 = vmatmul.mubr.bf16.gmra.mrb[0].mxu0 %v276
    %v410 = vpop.f32.mrb[0].mxu0
    %v411 = vadd.f32 %v91, %v410
    %v412 = vpop.f32.mrb[0].mxu0
    %v413 = vpop.f32.mrb[0].mxu0
    %v414 = vadd.f32 %v91, %v413
    %v415 = vpop.f32.mrb[0].mxu0
    %416 = vmatprep.mubr.bf16.mxu0 0
    %417 = vmatmul.mubr.bf16.gmra.mrb[0].mxu0 %v279
    %v418 = vpop.f32.mrb[0].mxu0
    %v419 = vadd.f32 %v91, %v418
    %v420 = vpop.f32.mrb[0].mxu0
    %v421 = vpop.f32.mrb[0].mxu0
    %v422 = vadd.f32 %v91, %v421
    %v423 = vpop.f32.mrb[0].mxu0
    %424 = vmatprep.mubr.bf16.mxu0 0
    %425 = vmatmul.mubr.bf16.gmra.mrb[0].mxu0 %v282
    %v426 = vpop.f32.mrb[0].mxu0
    %v427 = vadd.f32 %v91, %v426
    %v428 = vpop.f32.mrb[0].mxu0
    %v429 = vpop.f32.mrb[0].mxu0
    %v430 = vadd.f32 %v91, %v429
    %v431 = vpop.f32.mrb[0].mxu0
    %432 = vmatprep.mubr.bf16.mxu0 0
    %433 = vmatmul.mubr.bf16.gmra.mrb[0].mxu0 %v285
    %v434 = vpop.f32.mrb[0].mxu0
    %v435 = vadd.f32 %v91, %v434
    %v436 = vpop.f32.mrb[0].mxu0
    %v437 = vpop.f32.mrb[0].mxu0
    %v438 = vadd.f32 %v91, %v437
    %v439 = vpop.f32.mrb[0].mxu0
    %440 = vmatprep.mubr.bf16.mxu0 0
    %441 = vmatmul.mubr.bf16.gmra.mrb[0].mxu0 %v288
    %v442 = vpop.f32.mrb[0].mxu0
    %v443 = vadd.f32 %v91, %v442
    %v444 = vpop.f32.mrb[0].mxu0
    %v445 = vpop.f32.mrb[0].mxu0
    %v446 = vadd.f32 %v91, %v445
    %v447 = vpop.f32.mrb[0].mxu0
    %448 = vmatprep.mubr.bf16.mxu0 0
    %449 = vmatmul.mubr.bf16.gmra.mrb[0].mxu0 %v291
    %v450 = vpop.f32.mrb[0].mxu0
    %v451 = vadd.f32 %v91, %v450
    %v452 = vpop.f32.mrb[0].mxu0
    %v453 = vpop.f32.mrb[0].mxu0
    %v454 = vadd.f32 %v91, %v453
    %v455 = vpop.f32.mrb[0].mxu0
    %456 = vmatprep.mubr.bf16.mxu0 0
    %457 = vmatmul.mubr.bf16.gmra.mrb[0].mxu0 %v294
    %v458 = vpop.f32.mrb[0].mxu0
    %v459 = vadd.f32 %v91, %v458
    %v460 = vpop.f32.mrb[0].mxu0
    %v461 = vpop.f32.mrb[0].mxu0
    %v462 = vadd.f32 %v91, %v461
    %v463 = vpop.f32.mrb[0].mxu0
    %464 = vmatprep.mubr.bf16.mxu0 0
    %465 = vmatmul.mubr.bf16.gmra.mrb[0].mxu0 %v297
    %v466 = vpop.f32.mrb[0].mxu0
    %v467 = vadd.f32 %v91, %v466
    %v468 = vpop.f32.mrb[0].mxu0
    %v469 = vpop.f32.mrb[0].mxu0
    %v470 = vadd.f32 %v91, %v469
    %v471 = vpop.f32.mrb[0].mxu0
    %472 = vmatprep.mubr.bf16.mxu0 0
    %473 = vmatmul.mubr.bf16.gmra.mrb[0].mxu0 %v300
    %v474 = vpop.f32.mrb[0].mxu0
    %v475 = vadd.f32 %v91, %v474
    %v476 = vpop.f32.mrb[0].mxu0
    %v477 = vpop.f32.mrb[0].mxu0
    %v478 = vadd.f32 %v91, %v477
    %v479 = vpop.f32.mrb[0].mxu0
    %480 = vmatprep.mubr.bf16.mxu0 0
    %481 = vmatmul.mubr.bf16.gmra.mrb[0].mxu0 %v303
    %v482 = vpop.f32.mrb[0].mxu0
    %v483 = vadd.f32 %v91, %v482
    %v484 = vpop.f32.mrb[0].mxu0
    %v485 = vpop.f32.mrb[0].mxu0
    %v486 = vadd.f32 %v91, %v485
    %v487 = vpop.f32.mrb[0].mxu0
    %488 = vmatprep.mubr.bf16.mxu0 0
    %489 = vmatmul.mubr.bf16.gmra.mrb[0].mxu0 %v306
    %v490 = vpop.f32.mrb[0].mxu0
    %v491 = vadd.f32 %v91, %v490
    %v492 = vpop.f32.mrb[0].mxu0
    %v493 = vpop.f32.mrb[0].mxu0
    %v494 = vadd.f32 %v91, %v493
    %v495 = vpop.f32.mrb[0].mxu0
    %496 = vmatprep.mubr.bf16.mxu0 0
    %497 = vmatmul.mubr.bf16.gmra.mrb[0].mxu0 %v309
    %v498 = vpop.f32.mrb[0].mxu0
    %v499 = vadd.f32 %v91, %v498
    %v500 = vpop.f32.mrb[0].mxu0
    %v501 = vpop.f32.mrb[0].mxu0
    %v502 = vadd.f32 %v91, %v501
    %v503 = vpop.f32.mrb[0].mxu0
    %504 = vmatprep.mubr.bf16.mxu0 0
    %505 = vmatmul.mubr.bf16.gmra.mrb[0].mxu0 %v312
    %v506 = vpop.f32.mrb[0].mxu0
    %v507 = vadd.f32 %v91, %v506
    %v508 = vpop.f32.mrb[0].mxu0
    %v509 = vpop.f32.mrb[0].mxu0
    %v510 = vadd.f32 %v91, %v509
    %v511 = vpop.f32.mrb[0].mxu0
    %512 = vmatprep.mubr.bf16.mxu0 0
    %513 = vmatmul.mubr.bf16.gmra.mrb[0].mxu0 %v315
    %v514 = vpop.f32.mrb[0].mxu0
    %v515 = vadd.f32 %v91, %v514
    %v516 = vpop.f32.mrb[0].mxu0
    %v517 = vpop.f32.mrb[0].mxu0
    %v518 = vadd.f32 %v91, %v517
    %v519 = vpop.f32.mrb[0].mxu0
    %520 = vmatprep.mubr.bf16.mxu0 0
    %521 = vmatmul.mubr.bf16.gmra.mrb[0].mxu0 %v318
    %v522 = vpop.f32.mrb[0].mxu0
    %v523 = vadd.f32 %v91, %v522
    %v524 = vpop.f32.mrb[0].mxu0
    %v525 = vpop.f32.mrb[0].mxu0
    %v526 = vadd.f32 %v91, %v525
    %v527 = vpop.f32.mrb[0].mxu0
    %528 = vmatprep.mubr.bf16.mxu0 0
    %529 = vmatmul.mubr.bf16.gmra.mrb[0].mxu0 %v321
    %v530 = vpop.f32.mrb[0].mxu0
    %v531 = vadd.f32 %v91, %v530
    %v532 = vpop.f32.mrb[0].mxu0
    %v533 = vpop.f32.mrb[0].mxu0
    %v534 = vadd.f32 %v91, %v533
    %v535 = vpop.f32.mrb[0].mxu0
    %536 = vmatprep.mubr.bf16.mxu0 0
    %537 = vmatmul.mubr.bf16.gmra.mrb[0].mxu0 %v324
    %v538 = vpop.f32.mrb[0].mxu0
    %v539 = vadd.f32 %v91, %v538
    %v540 = vpop.f32.mrb[0].mxu0
    %v541 = vpop.f32.mrb[0].mxu0
    %v542 = vadd.f32 %v91, %v541
    %v543 = vpop.f32.mrb[0].mxu0
    %544 = vmatprep.mubr.bf16.mxu0 0
    %545 = vmatmul.mubr.bf16.gmra.mrb[0].mxu0 %v327
    %v546 = vpop.f32.mrb[0].mxu0
    %v547 = vadd.f32 %v91, %v546
    %v548 = vpop.f32.mrb[0].mxu0
    %v549 = vpop.f32.mrb[0].mxu0
    %v550 = vadd.f32 %v91, %v549
    %v551 = vpop.f32.mrb[0].mxu0
    %552 = vmatprep.mubr.bf16.mxu0 0
    %553 = vmatmul.mubr.bf16.gmra.mrb[0].mxu0 %v330
    %v554 = vpop.f32.mrb[0].mxu0
    %v555 = vadd.f32 %v91, %v554
    %v556 = vpop.f32.mrb[0].mxu0
    %v557 = vpop.f32.mrb[0].mxu0
    %v558 = vadd.f32 %v91, %v557
    %v559 = vpop.f32.mrb[0].mxu0
    %560 = vmatprep.mubr.bf16.mxu0 0
    %561 = vmatmul.mubr.bf16.gmra.mrb[0].mxu0 %v333
    %v562 = vpop.f32.mrb[0].mxu0
    %v563 = vadd.f32 %v91, %v562
    %v564 = vpop.f32.mrb[0].mxu0
    %v565 = vpop.f32.mrb[0].mxu0
    %v566 = vadd.f32 %v91, %v565
    %v567 = vpop.f32.mrb[0].mxu0
    %568 = vmatprep.mubr.bf16.mxu0 0
    %569 = vmatmul.mubr.bf16.gmra.mrb[0].mxu0 %v336
    %v570 = vpop.f32.mrb[0].mxu0
    %v571 = vadd.f32 %v91, %v570
    %v572 = vpop.f32.mrb[0].mxu0
    %v573 = vpop.f32.mrb[0].mxu0
    %v574 = vadd.f32 %v91, %v573
    %v575 = vpop.f32.mrb[0].mxu0
    %576 = vmatprep.mubr.bf16.mxu0 0
    %577 = vmatmul.mubr.bf16.gmra.mrb[0].mxu0 %v339
    %v578 = vpop.f32.mrb[0].mxu0
    %v579 = vadd.f32 %v91, %v578
    %v580 = vpop.f32.mrb[0].mxu0
    %v581 = vpop.f32.mrb[0].mxu0
    %v582 = vadd.f32 %v91, %v581
    %v583 = vpop.f32.mrb[0].mxu0
    %584 = vmatprep.mubr.bf16.mxu0 0
    %585 = vmatmul.mubr.bf16.gmra.mrb[0].mxu0 %v342
    %v586 = vpop.f32.mrb[0].mxu0
    %v587 = vadd.f32 %v91, %v586
    %v588 = vpop.f32.mrb[0].mxu0
    %v589 = vpop.f32.mrb[0].mxu0
    %v590 = vadd.f32 %v91, %v589
    %v591 = vpop.f32.mrb[0].mxu0
    %592 = vmatprep.mubr.bf16.mxu0 0
    %593 = vmatmul.mubr.bf16.gmra.mrb[0].mxu0 %v345
    %v594 = vpop.f32.mrb[0].mxu0
    %v595 = vadd.f32 %v91, %v594
    %v596 = vpop.f32.mrb[0].mxu0
    %v597 = vpop.f32.mrb[0].mxu0
    %v598 = vadd.f32 %v91, %v597
    %v599 = vpop.f32.mrb[0].mxu0
    %600 = vmatprep.mubr.bf16.mxu0 0
    %601 = vmatmul.mubr.bf16.gmra.mrb[0].mxu0 %v348
    %v602 = vpop.f32.mrb[0].mxu0
    %v603 = vadd.f32 %v91, %v602
    %v604 = vpop.f32.mrb[0].mxu0
    %v605 = vpop.f32.mrb[0].mxu0
    %v606 = vadd.f32 %v91, %v605
    %v607 = vpop.f32.mrb[0].mxu0
    %608 = vmatprep.mubr.bf16.mxu0 0
    %609 = vmatmul.mubr.bf16.gmra.mrb[0].mxu0 %v351
    %v610 = vpop.f32.mrb[0].mxu0
    %v611 = vadd.f32 %v91, %v610
    %v612 = vpop.f32.mrb[0].mxu0
    %v613 = vpop.f32.mrb[0].mxu0
    %v614 = vadd.f32 %v91, %v613
    %v615 = vpop.f32.mrb[0].mxu0
    %616 = vmatprep.mubr.bf16.mxu0 0
    %617 = vmatmul.mubr.bf16.gmra.mrb[0].mxu0 %v354
    %v618 = vpop.f32.mrb[0].mxu0
    %v619 = vadd.f32 %v91, %v618
    %v620 = vpop.f32.mrb[0].mxu0
    %v621 = vpop.f32.mrb[0].mxu0
    %v622 = vadd.f32 %v91, %v621
    %v623 = vpop.f32.mrb[0].mxu0
    %624 = vmatprep.mubr.bf16.mxu0 0
    %625 = vmatmul.mubr.bf16.gmra.mrb[0].mxu0 %v357
    %v626 = vpop.f32.mrb[0].mxu0
    %v627 = vadd.f32 %v91, %v626
    %v628 = vpop.f32.mrb[0].mxu0
    %v629 = vpop.f32.mrb[0].mxu0
    %v630 = vadd.f32 %v91, %v629
    %v631 = vpop.f32.mrb[0].mxu0
    %632 = vmatprep.mubr.bf16.mxu0 0
    %633 = vmatmul.mubr.bf16.gmra.mrb[0].mxu0 %v360
    %v634 = vpop.f32.mrb[0].mxu0
    %v635 = vadd.f32 %v91, %v634
    %v636 = vpop.f32.mrb[0].mxu0
    %v637 = vpop.f32.mrb[0].mxu0
    %v638 = vadd.f32 %v91, %v637
    %v639 = vpop.f32.mrb[0].mxu0
    %640 = vmatprep.mubr.bf16.mxu0 0
    %641 = vmatmul.mubr.bf16.gmra.mrb[0].mxu0 %v363
    %v642 = vpop.f32.mrb[0].mxu0
    %v643 = vadd.f32 %v91, %v642
    %v644 = vpop.f32.mrb[0].mxu0
    %v645 = vpop.f32.mrb[0].mxu0
    %v646 = vadd.f32 %v91, %v645
    %v647 = vpop.f32.mrb[0].mxu0
    %648 = vmatprep.mubr.bf16.mxu0 0
    %649 = vmatmul.mubr.bf16.gmra.mrb[0].mxu0 %v366
    %v650 = vpop.f32.mrb[0].mxu0
    %v651 = vadd.f32 %v91, %v650
    %v652 = vpop.f32.mrb[0].mxu0
    %v653 = vpop.f32.mrb[0].mxu0
    %v654 = vadd.f32 %v91, %v653
    %v655 = vpop.f32.mrb[0].mxu0
    %656 = vdwg.mxu0
    %v657 = vmax.f32 %v403, 0.0
    %v658 = vmax.f32 %v406, 0.0
    %v659 = vmax.f32 %v411, 0.0
    %v660 = vmax.f32 %v414, 0.0
    %v661 = vmax.f32 %v419, 0.0
    %v662 = vmax.f32 %v422, 0.0
    %v663 = vmax.f32 %v427, 0.0
    %v664 = vmax.f32 %v430, 0.0
    %v665 = vmax.f32 %v435, 0.0
    %v666 = vmax.f32 %v438, 0.0
    %v667 = vmax.f32 %v443, 0.0
    %v668 = vmax.f32 %v446, 0.0
    %v669 = vmax.f32 %v451, 0.0
    %v670 = vmax.f32 %v454, 0.0
    %v671 = vmax.f32 %v459, 0.0
    %v672 = vmax.f32 %v462, 0.0
    %v673 = vmax.f32 %v467, 0.0
    %v674 = vmax.f32 %v470, 0.0
    %v675 = vmax.f32 %v475, 0.0
    %v676 = vmax.f32 %v478, 0.0
    %v677 = vmax.f32 %v483, 0.0
    %v678 = vmax.f32 %v486, 0.0
    %v679 = vmax.f32 %v491, 0.0
    %v680 = vmax.f32 %v494, 0.0
    %v681 = vmax.f32 %v499, 0.0
    %v682 = vmax.f32 %v502, 0.0
    %v683 = vmax.f32 %v507, 0.0
    %v684 = vmax.f32 %v510, 0.0
    %v685 = vmax.f32 %v515, 0.0
    %v686 = vmax.f32 %v518, 0.0
    %v687 = vmax.f32 %v523, 0.0
    %v688 = vmax.f32 %v526, 0.0
    %v689 = vmax.f32 %v531, 0.0
    %v690 = vmax.f32 %v534, 0.0
    %v691 = vmax.f32 %v539, 0.0
    %v692 = vmax.f32 %v542, 0.0
    %v693 = vmax.f32 %v547, 0.0
    %v694 = vmax.f32 %v550, 0.0
    %v695 = vmax.f32 %v555, 0.0
    %v696 = vmax.f32 %v558, 0.0
    %v697 = vmax.f32 %v563, 0.0
    %v698 = vmax.f32 %v566, 0.0
    %v699 = vmax.f32 %v571, 0.0
    %v700 = vmax.f32 %v574, 0.0
    %v701 = vmax.f32 %v579, 0.0
    %v702 = vmax.f32 %v582, 0.0
    %v703 = vmax.f32 %v587, 0.0
    %v704 = vmax.f32 %v590, 0.0
    %v705 = vmax.f32 %v595, 0.0
    %v706 = vmax.f32 %v598, 0.0
    %v707 = vmax.f32 %v603, 0.0
    %v708 = vmax.f32 %v606, 0.0
    %v709 = vmax.f32 %v611, 0.0
    %v710 = vmax.f32 %v614, 0.0
    %v711 = vmax.f32 %v619, 0.0
    %v712 = vmax.f32 %v622, 0.0
    %v713 = vmax.f32 %v627, 0.0
    %v714 = vmax.f32 %v630, 0.0
    %v715 = vmax.f32 %v635, 0.0
    %v716 = vmax.f32 %v638, 0.0
    %v717 = vmax.f32 %v643, 0.0
    %v718 = vmax.f32 %v646, 0.0
    %v719 = vmax.f32 %v651, 0.0
    %v720 = vmax.f32 %v654, 0.0
    %v721 = vpack.c.bf16 %v658, %v657
    %v722 = vpack.c.bf16 %v660, %v659
    %v723 = vpack.c.bf16 %v662, %v661
    %v724 = vpack.c.bf16 %v664, %v663
    %v725 = vpack.c.bf16 %v666, %v665
    %v726 = vpack.c.bf16 %v668, %v667
    %v727 = vpack.c.bf16 %v670, %v669
    %v728 = vpack.c.bf16 %v672, %v671
    %v729 = vpack.c.bf16 %v674, %v673
    %v730 = vpack.c.bf16 %v676, %v675
    %v731 = vpack.c.bf16 %v678, %v677
    %v732 = vpack.c.bf16 %v680, %v679
    %v733 = vpack.c.bf16 %v682, %v681
    %v734 = vpack.c.bf16 %v684, %v683
    %v735 = vpack.c.bf16 %v686, %v685
    %v736 = vpack.c.bf16 %v688, %v687
    %v737 = vpack.c.bf16 %v690, %v689
    %v738 = vpack.c.bf16 %v692, %v691
    %v739 = vpack.c.bf16 %v694, %v693
    %v740 = vpack.c.bf16 %v696, %v695
    %v741 = vpack.c.bf16 %v698, %v697
    %v742 = vpack.c.bf16 %v700, %v699
    %v743 = vpack.c.bf16 %v702, %v701
    %v744 = vpack.c.bf16 %v704, %v703
    %v745 = vpack.c.bf16 %v706, %v705
    %v746 = vpack.c.bf16 %v708, %v707
    %v747 = vpack.c.bf16 %v710, %v709
    %v748 = vpack.c.bf16 %v712, %v711
    %v749 = vpack.c.bf16 %v714, %v713
    %v750 = vpack.c.bf16 %v716, %v715
    %v751 = vpack.c.bf16 %v718, %v717
    %v752 = vpack.c.bf16 %v720, %v719
    %v785 = vunpack.c.l.b16 %v721
    %v786 = vunpack.c.h.b16 %v721
    %v787 = vunpack.c.l.b16 %v722
    %v788 = vunpack.c.h.b16 %v722
    %v789 = vunpack.c.l.b16 %v723
    %v790 = vunpack.c.h.b16 %v723
    %v791 = vunpack.c.l.b16 %v724
    %v792 = vunpack.c.h.b16 %v724
    %v793 = vunpack.c.l.b16 %v725
    %v794 = vunpack.c.h.b16 %v725
    %v795 = vunpack.c.l.b16 %v726
    %v796 = vunpack.c.h.b16 %v726
    %v797 = vunpack.c.l.b16 %v727
    %v798 = vunpack.c.h.b16 %v727
    %v799 = vunpack.c.l.b16 %v728
    %v800 = vunpack.c.h.b16 %v728
    %v801 = vunpack.c.l.b16 %v729
    %v802 = vunpack.c.h.b16 %v729
    %v803 = vunpack.c.l.b16 %v730
    %v804 = vunpack.c.h.b16 %v730
    %v805 = vunpack.c.l.b16 %v731
    %v806 = vunpack.c.h.b16 %v731
    %v807 = vunpack.c.l.b16 %v732
    %v808 = vunpack.c.h.b16 %v732
    %v809 = vunpack.c.l.b16 %v733
    %v810 = vunpack.c.h.b16 %v733
    %v811 = vunpack.c.l.b16 %v734
    %v812 = vunpack.c.h.b16 %v734
    %v813 = vunpack.c.l.b16 %v735
    %v814 = vunpack.c.h.b16 %v735
    %v815 = vunpack.c.l.b16 %v736
    %v816 = vunpack.c.h.b16 %v736
    %v817 = vunpack.c.l.b16 %v737
    %v818 = vunpack.c.h.b16 %v737
    %v819 = vunpack.c.l.b16 %v738
    %v820 = vunpack.c.h.b16 %v738
    %v821 = vunpack.c.l.b16 %v739
    %v822 = vunpack.c.h.b16 %v739
    %v823 = vunpack.c.l.b16 %v740
    %v824 = vunpack.c.h.b16 %v740
    %v825 = vunpack.c.l.b16 %v741
    %v826 = vunpack.c.h.b16 %v741
    %v827 = vunpack.c.l.b16 %v742
    %v828 = vunpack.c.h.b16 %v742
    %v829 = vunpack.c.l.b16 %v743
    %v830 = vunpack.c.h.b16 %v743
    %v831 = vunpack.c.l.b16 %v744
    %v832 = vunpack.c.h.b16 %v744
    %v833 = vunpack.c.l.b16 %v745
    %v834 = vunpack.c.h.b16 %v745
    %v835 = vunpack.c.l.b16 %v746
    %v836 = vunpack.c.h.b16 %v746
    %v837 = vunpack.c.l.b16 %v747
    %v838 = vunpack.c.h.b16 %v747
    %v839 = vunpack.c.l.b16 %v748
    %v840 = vunpack.c.h.b16 %v748
    %v841 = vunpack.c.l.b16 %v749
    %v842 = vunpack.c.h.b16 %v749
    %v843 = vunpack.c.l.b16 %v750
    %v844 = vunpack.c.h.b16 %v750
    %v845 = vunpack.c.l.b16 %v751
    %v846 = vunpack.c.h.b16 %v751
    %v847 = vunpack.c.l.b16 %v752
    %v848 = vunpack.c.h.b16 %v752
    %v849 = vpack.c.b16 %v785, %v785
    %v850 = vpack.c.b16 %v786, %v786
    %v851 = vpack.c.b16 %v787, %v787
    %v852 = vpack.c.b16 %v788, %v788
    %v853 = vpack.c.b16 %v789, %v789
    %v854 = vpack.c.b16 %v790, %v790
    %v855 = vpack.c.b16 %v791, %v791
    %v856 = vpack.c.b16 %v792, %v792
    %v857 = vpack.c.b16 %v793, %v793
    %v858 = vpack.c.b16 %v794, %v794
    %v859 = vpack.c.b16 %v795, %v795
    %v860 = vpack.c.b16 %v796, %v796
    %v861 = vpack.c.b16 %v797, %v797
    %v862 = vpack.c.b16 %v798, %v798
    %v863 = vpack.c.b16 %v799, %v799
    %v864 = vpack.c.b16 %v800, %v800
    %v865 = vpack.c.b16 %v801, %v801
    %v866 = vpack.c.b16 %v802, %v802
    %v867 = vpack.c.b16 %v803, %v803
    %v868 = vpack.c.b16 %v804, %v804
    %v869 = vpack.c.b16 %v805, %v805
    %v870 = vpack.c.b16 %v806, %v806
    %v871 = vpack.c.b16 %v807, %v807
    %v872 = vpack.c.b16 %v808, %v808
    %v873 = vpack.c.b16 %v809, %v809
    %v874 = vpack.c.b16 %v810, %v810
    %v875 = vpack.c.b16 %v811, %v811
    %v876 = vpack.c.b16 %v812, %v812
    %v877 = vpack.c.b16 %v813, %v813
    %v878 = vpack.c.b16 %v814, %v814
    %v879 = vpack.c.b16 %v815, %v815
    %v880 = vpack.c.b16 %v816, %v816
    %v881 = vpack.c.b16 %v817, %v817
    %v882 = vpack.c.b16 %v818, %v818
    %v883 = vpack.c.b16 %v819, %v819
    %v884 = vpack.c.b16 %v820, %v820
    %v885 = vpack.c.b16 %v821, %v821
    %v886 = vpack.c.b16 %v822, %v822
    %v887 = vpack.c.b16 %v823, %v823
    %v888 = vpack.c.b16 %v824, %v824
    %v889 = vpack.c.b16 %v825, %v825
    %v890 = vpack.c.b16 %v826, %v826
    %v891 = vpack.c.b16 %v827, %v827
    %v892 = vpack.c.b16 %v828, %v828
    %v893 = vpack.c.b16 %v829, %v829
    %v894 = vpack.c.b16 %v830, %v830
    %v895 = vpack.c.b16 %v831, %v831
    %v896 = vpack.c.b16 %v832, %v832
    %v897 = vpack.c.b16 %v833, %v833
    %v898 = vpack.c.b16 %v834, %v834
    %v899 = vpack.c.b16 %v835, %v835
    %v900 = vpack.c.b16 %v836, %v836
    %v901 = vpack.c.b16 %v837, %v837
    %v902 = vpack.c.b16 %v838, %v838
    %v903 = vpack.c.b16 %v839, %v839
    %v904 = vpack.c.b16 %v840, %v840
    %v905 = vpack.c.b16 %v841, %v841
    %v906 = vpack.c.b16 %v842, %v842
    %v907 = vpack.c.b16 %v843, %v843
    %v908 = vpack.c.b16 %v844, %v844
    %v909 = vpack.c.b16 %v845, %v845
    %v910 = vpack.c.b16 %v846, %v846
    %v911 = vpack.c.b16 %v847, %v847
    %v912 = vpack.c.b16 %v848, %v848
    %977 = vst [vmem:[#allocation2] sm:$0xf] %v849
    %978 = vst [vmem:[#allocation2 + $0x4] sm:$0xf] %v850
    %979 = vst [vmem:[#allocation2 + $0x8] sm:$0xf] %v851
    %980 = vst [vmem:[#allocation2 + $0xc] sm:$0xf] %v852
    %981 = vst [vmem:[#allocation2 + $0x10] sm:$0xf] %v853
    %982 = vst [vmem:[#allocation2 + $0x14] sm:$0xf] %v854
    %983 = vst [vmem:[#allocation2 + $0x18] sm:$0xf] %v855
    %984 = vst [vmem:[#allocation2 + $0x1c] sm:$0xf] %v856
    %985 = vst [vmem:[#allocation2 + $0x20] sm:$0xf] %v857
    %986 = vst [vmem:[#allocation2 + $0x24] sm:$0xf] %v858
    %987 = vst [vmem:[#allocation2 + $0x28] sm:$0xf] %v859
    %988 = vst [vmem:[#allocation2 + $0x2c] sm:$0xf] %v860
    %989 = vst [vmem:[#allocation2 + $0x30] sm:$0xf] %v861
    %990 = vst [vmem:[#allocation2 + $0x34] sm:$0xf] %v862
    %991 = vst [vmem:[#allocation2 + $0x38] sm:$0xf] %v863
    %992 = vst [vmem:[#allocation2 + $0x3c] sm:$0xf] %v864
    %993 = vst [vmem:[#allocation2 + $0x40] sm:$0xf] %v865
    %994 = vst [vmem:[#allocation2 + $0x44] sm:$0xf] %v866
    %995 = vst [vmem:[#allocation2 + $0x48] sm:$0xf] %v867
    %996 = vst [vmem:[#allocation2 + $0x4c] sm:$0xf] %v868
    %997 = vst [vmem:[#allocation2 + $0x50] sm:$0xf] %v869
    %998 = vst [vmem:[#allocation2 + $0x54] sm:$0xf] %v870
    %999 = vst [vmem:[#allocation2 + $0x58] sm:$0xf] %v871
    %1000 = vst [vmem:[#allocation2 + $0x5c] sm:$0xf] %v872
    %1001 = vst [vmem:[#allocation2 + $0x60] sm:$0xf] %v873
    %1002 = vst [vmem:[#allocation2 + $0x64] sm:$0xf] %v874
    %1003 = vst [vmem:[#allocation2 + $0x68] sm:$0xf] %v875
    %1004 = vst [vmem:[#allocation2 + $0x6c] sm:$0xf] %v876
    %1005 = vst [vmem:[#allocation2 + $0x70] sm:$0xf] %v877
    %1006 = vst [vmem:[#allocation2 + $0x74] sm:$0xf] %v878
    %1007 = vst [vmem:[#allocation2 + $0x78] sm:$0xf] %v879
    %1008 = vst [vmem:[#allocation2 + $0x7c] sm:$0xf] %v880
    %1009 = vst [vmem:[#allocation2 + $0x80] sm:$0xf] %v881
    %1010 = vst [vmem:[#allocation2 + $0x84] sm:$0xf] %v882
    %1011 = vst [vmem:[#allocation2 + $0x88] sm:$0xf] %v883
    %1012 = vst [vmem:[#allocation2 + $0x8c] sm:$0xf] %v884
    %1013 = vst [vmem:[#allocation2 + $0x90] sm:$0xf] %v885
    %1014 = vst [vmem:[#allocation2 + $0x94] sm:$0xf] %v886
    %1015 = vst [vmem:[#allocation2 + $0x98] sm:$0xf] %v887
    %1016 = vst [vmem:[#allocation2 + $0x9c] sm:$0xf] %v888
    %1017 = vst [vmem:[#allocation2 + $0xa0] sm:$0xf] %v889
    %1018 = vst [vmem:[#allocation2 + $0xa4] sm:$0xf] %v890
    %1019 = vst [vmem:[#allocation2 + $0xa8] sm:$0xf] %v891
    %1020 = vst [vmem:[#allocation2 + $0xac] sm:$0xf] %v892
    %1021 = vst [vmem:[#allocation2 + $0xb0] sm:$0xf] %v893
    %1022 = vst [vmem:[#allocation2 + $0xb4] sm:$0xf] %v894
    %1023 = vst [vmem:[#allocation2 + $0xb8] sm:$0xf] %v895
    %1024 = vst [vmem:[#allocation2 + $0xbc] sm:$0xf] %v896
    %1025 = vst [vmem:[#allocation2 + $0xc0] sm:$0xf] %v897
    %1026 = vst [vmem:[#allocation2 + $0xc4] sm:$0xf] %v898
    %1027 = vst [vmem:[#allocation2 + $0xc8] sm:$0xf] %v899
    %1028 = vst [vmem:[#allocation2 + $0xcc] sm:$0xf] %v900
    %1029 = vst [vmem:[#allocation2 + $0xd0] sm:$0xf] %v901
    %1030 = vst [vmem:[#allocation2 + $0xd4] sm:$0xf] %v902
    %1031 = vst [vmem:[#allocation2 + $0xd8] sm:$0xf] %v903
    %1032 = vst [vmem:[#allocation2 + $0xdc] sm:$0xf] %v904
    %1033 = vst [vmem:[#allocation2 + $0xe0] sm:$0xf] %v905
    %1034 = vst [vmem:[#allocation2 + $0xe4] sm:$0xf] %v906
    %1035 = vst [vmem:[#allocation2 + $0xe8] sm:$0xf] %v907
    %1036 = vst [vmem:[#allocation2 + $0xec] sm:$0xf] %v908
    %1037 = vst [vmem:[#allocation2 + $0xf0] sm:$0xf] %v909
    %1038 = vst [vmem:[#allocation2 + $0xf4] sm:$0xf] %v910
    %1039 = vst [vmem:[#allocation2 + $0xf8] sm:$0xf] %v911
    %1040 = vst [vmem:[#allocation2 + $0xfc] sm:$0xf] %v912
    // Predicated region
    $region14: #{tpu_custom_call.1} parent=1 // pred_check
      _
    $region15: #{tpu_custom_call.1} parent=1 // pred_check_branch
      %1042 = sbr.rel (0) target = $region17
    $region16: #{tpu_custom_call.1} parent=1 // pred_region
      %s1044 = ssub.s32 4096, 4096
      %1045 = vsyncadd [#allocation3], %s1044
      %s1046 = sshll.u32 [#allocation2], 4
      %s1047 = int_to_ptr.vmem [resolvable:$true] %s1046
      %1052 = dma.vmem_to_hbm [thread:$0]  %s1047, 4096, %s3, [#allocation3], 64, 64, 4
    $region17: #{tpu_custom_call.1} parent=1 // pred_fallthru
      _
    // Predicated region
    $region18: #{tpu_custom_call.1} parent=1 // pred_check
      _
    $region19: #{tpu_custom_call.1} parent=1 // pred_check_branch
      %1054 = sbr.rel (0) target = $region21
    $region20: #{tpu_custom_call.1} parent=1 // pred_region
      %1055 = dma.done [#allocation3], 4096
    $region21: #{tpu_custom_call.1} parent=1 // pred_fallthru
      _
    %1056 = vsyncpa [#allocation3], 1

</llo_original>
